<compile_context>
chip_gen: v7x
topology: tpu7x:2x2x1
jax: 0.10.0
libtpu: 0.0.40
codegen_flags: <defaults>
</compile_context>

<pallas_src>
import math

import jax
import jax.numpy as jnp
from jax.experimental import pallas as pl
from jax.experimental.pallas import tpu as pltpu


def _make_kernel(OH, OW, OC, K4):
    M = OH * OW
    taps = ((0, 0), (0, 1), (1, 0), (1, 1))

    def kernel(xs_ref, wd_ref, b_ref, o_ref):
        # xs_ref: (OH+1, OW+1, 4C)  space-to-depth of the padded image (one batch elem)
        # wd_ref: (4, OC, 4C)       per-tap flattened conv weight
        # b_ref : (OC, 1)           bias, f32
        # o_ref : (OC, OH*OW)       lane-dense output block
        x_img = xs_ref[...]
        acc = None
        for t, (dh, dw) in enumerate(taps):
            tap = x_img[dh:dh + OH, dw:dw + OW, :].reshape(M, K4)      # (M, K4)
            part = jax.lax.dot_general(
                wd_ref[t], tap,
                dimension_numbers=(((1,), (1,)), ((), ())),            # (OC,K4) x (M,K4)^T -> (OC,M)
                preferred_element_type=jnp.float32)
            acc = part if acc is None else acc + part
        o_ref[...] = (acc + b_ref[...]).astype(o_ref.dtype)

    return kernel


def downsample_forward(x, weight, bias, last=False, operand_dtype=None):
    """Pallas implementation of Downsample.forward.

    x:      (B, L, C)      -- same layout as the PyTorch module input (L = H*W, square)
    weight: (OC, C, 4, 4)  -- PyTorch Conv2d OIHW weight
    bias:   (OC,)
    operand_dtype: optionally jnp.bfloat16 on v6e/v7x (accumulation stays f32).
    """
    B, L, C = x.shape
    H = int(round(math.sqrt(L)))
    W = H
    assert H * W == L, "Downsample expects a square spatial grid (L = H*W)"
    assert H % 2 == 0 and W % 2 == 0, "k=4, s=2, p=1 downsample expects even H, W"
    OC, IC, KH, KW = weight.shape
    assert IC == C and KH == 4 and KW == 4

    OH, OW = H // 2, W // 2
    HB, WB = OH + 1, OW + 1          # space-to-depth spatial dims of the padded image
    K4 = 4 * C                       # per-tap contraction size
    M = OH * OW

    op_dtype = x.dtype if operand_dtype is None else operand_dtype

    # ---- glue: NHWC + zero-pad + space-to-depth (≈1x input traffic; no 4x im2col in HBM)
    img = x.reshape(B, H, W, C)                                   # NHWC view of (B, L, C)
    xp = jnp.pad(img, ((0, 0), (1, 1), (1, 1), (0, 0)))           # (B, H+2, W+2, C)
    xs = xp.reshape(B, HB, 2, WB, 2, C).transpose(0, 1, 3, 2, 4, 5)
    xs = xs.reshape(B, HB, WB, K4).astype(op_dtype)               # (B, OH+1, OW+1, 4C)

    # weight (OC, C, 4, 4) -> wd[t=2*dh+dw][oc, sh*2C + sw*C + c] = w[oc, c, 2dh+sh, 2dw+sw]
    w_r = jnp.transpose(weight, (2, 3, 0, 1))                     # (kh, kw, oc, c)
    w_r = w_r.reshape(2, 2, 2, 2, OC, C)                          # (dh, sh, dw, sw, oc, c)
    w_r = jnp.transpose(w_r, (0, 2, 4, 1, 3, 5))                  # (dh, dw, oc, sh, sw, c)
    wd = w_r.reshape(4, OC, K4).astype(op_dtype)                  # (4, OC, 4C)
    b_mat = bias.reshape(OC, 1).astype(jnp.float32)

    # ---- scoped VMEM limit from the per-step footprint (headroom under v7x 64 MiB)
    isz = jnp.dtype(op_dtype).itemsize
    xs_blk = HB * WB * K4 * isz
    out_blk = OC * M * jnp.dtype(x.dtype).itemsize
    wd_blk = 4 * OC * K4 * isz
    need = 8 * xs_blk + 4 * out_blk + 2 * wd_blk + (1 << 20)
    vmem_limit = int(min(max(need, 32 << 20), 56 << 20))

    kernel = _make_kernel(OH, OW, OC, K4)

    out_lane = pl.pallas_call(
        kernel,
        out_shape=jax.ShapeDtypeStruct((B, OC, M), x.dtype),
        grid=(B,),                    # one whole image per step; B>=2 feeds both v7x TCs
        in_specs=[
            pl.BlockSpec((None, HB, WB, K4), lambda b: (b, 0, 0, 0)),
            pl.BlockSpec((4, OC, K4), lambda b: (0, 0, 0)),       # constant index -> fetched once
            pl.BlockSpec((OC, 1), lambda b: (0, 0)),
        ],
        out_specs=pl.BlockSpec((None, OC, M), lambda b: (b, 0, 0)),
        compiler_params=pltpu.CompilerParams(
            dimension_semantics=("parallel",),
            vmem_limit_bytes=vmem_limit),
    )(xs, wd, b_mat)

    if last:
        return out_lane.reshape(B, OC, OH, OW)                    # already NCHW, no transpose
    return jnp.transpose(out_lane, (0, 2, 1))                     # (B, OH*OW, OC)


if __name__ == "__main__":
    # Small shapes consistent with the module: B=2, H=W=16 -> L=256, C_in=4, C_out=8.
    B, H, W = 2, 16, 16
    in_channel, out_channel = 4, 8
    L = H * W

    key = jax.random.PRNGKey(0)
    kx, kw, kb = jax.random.split(key, 3)

    x = jax.random.normal(kx, (B, L, in_channel), dtype=jnp.float32)

    fan_in = in_channel * 4 * 4
    bound = 1.0 / math.sqrt(fan_in)
    weight = jax.random.uniform(kw, (out_channel, in_channel, 4, 4),
                                minval=-bound, maxval=bound, dtype=jnp.float32)
    bias = jax.random.uniform(kb, (out_channel,),
                              minval=-bound, maxval=bound, dtype=jnp.float32)

    fwd = jax.jit(downsample_forward, static_argnames=("last", "operand_dtype"))

    out = jax.block_until_ready(fwd(x, weight, bias, last=False))
    out_last = jax.block_until_ready(fwd(x, weight, bias, last=True))
    assert out.shape == (B, (H // 2) * (W // 2), out_channel)
    assert out_last.shape == (B, out_channel, H // 2, W // 2)

    # Silent correctness check against XLA's conv (f32 path kept by default).
    x_img = jnp.transpose(x, (0, 2, 1)).reshape(B, in_channel, H, W)
    ref = jax.lax.conv_general_dilated(
        x_img, weight, window_strides=(2, 2), padding=((1, 1), (1, 1)),
        dimension_numbers=("NCHW", "OIHW", "NCHW")) + bias[None, :, None, None]
    ref_flat = jnp.transpose(ref.reshape(B, out_channel, -1), (0, 2, 1))
    assert jnp.allclose(out, ref_flat, atol=2e-4, rtol=2e-4), "mismatch vs XLA conv (last=False)"
    assert jnp.allclose(out_last, ref, atol=2e-4, rtol=2e-4), "mismatch vs XLA conv (last=True)"

    print("KERNEL_OK")
</pallas_src>

<mosaic_0001>
module attributes {stable_mosaic.version = 11 : i64} {
  func.func @kernel(%arg0: i32, %arg1: memref<1x9x9x16xf32, #tpu.memory_space<vmem>>, %arg2: memref<4x8x16xf32, #tpu.memory_space<vmem>>, %arg3: memref<8x1xf32, #tpu.memory_space<vmem>>, %arg4: memref<1x8x64xf32, #tpu.memory_space<vmem>>) attributes {dimension_semantics = [#tpu.dimension_semantics<parallel>], iteration_bounds = array<i64: 2>, scalar_prefetch = 0 : i64, scratch_operands = 0 : i64, tpu.core_type = #tpu.core_type<tc>, window_params = [{transform_indices = @transform_0, window_bounds = array<i64: 1, 9, 9, 16>}, {pipeline_mode = #tpu.pipeline_mode<synchronous>, transform_indices = @transform_1, window_bounds = array<i64: 4, 8, 16>}, {pipeline_mode = #tpu.pipeline_mode<synchronous>, transform_indices = @transform_2, window_bounds = array<i64: 8, 1>}, {transform_indices = @transform_3, window_bounds = array<i64: 1, 8, 64>}]} {
    %c0 = arith.constant 0 : index
    %c0_0 = arith.constant 0 : index
    %c0_1 = arith.constant 0 : index
    %c0_2 = arith.constant 0 : index
    %0 = vector.load %arg1[%c0, %c0_0, %c0_1, %c0_2] : memref<1x9x9x16xf32, #tpu.memory_space<vmem>>, vector<1x9x9x16xf32>
    %1 = vector.shape_cast %0 : vector<1x9x9x16xf32> to vector<9x9x16xf32>
    %2 = vector.extract_strided_slice %1 {offsets = [0, 0, 0], sizes = [8, 8, 16], strides = [1, 1, 1]} : vector<9x9x16xf32> to vector<8x8x16xf32>
    %3 = vector.shape_cast %2 : vector<8x8x16xf32> to vector<64x16xf32>
    %c0_3 = arith.constant 0 : index
    %c0_4 = arith.constant 0 : index
    %c0_5 = arith.constant 0 : index
    %4 = vector.load %arg2[%c0_3, %c0_4, %c0_5] : memref<4x8x16xf32, #tpu.memory_space<vmem>>, vector<1x8x16xf32>
    %5 = vector.shape_cast %4 : vector<1x8x16xf32> to vector<8x16xf32>
    %cst = arith.constant dense<0.000000e+00> : vector<8x64xf32>
    %6 = tpu.matmul %5, %3, %cst {dimension_numbers = #tpu.dot_dimension_numbers<[1], [1], [0], [0], [0, 0, 1, 0], [], []>} : vector<8x16xf32>, vector<64x16xf32>, vector<8x64xf32> -> vector<8x64xf32>
    %7 = vector.extract_strided_slice %1 {offsets = [0, 1, 0], sizes = [8, 8, 16], strides = [1, 1, 1]} : vector<9x9x16xf32> to vector<8x8x16xf32>
    %8 = vector.shape_cast %7 : vector<8x8x16xf32> to vector<64x16xf32>
    %c1 = arith.constant 1 : index
    %c0_6 = arith.constant 0 : index
    %c0_7 = arith.constant 0 : index
    %9 = vector.load %arg2[%c1, %c0_6, %c0_7] : memref<4x8x16xf32, #tpu.memory_space<vmem>>, vector<1x8x16xf32>
    %10 = vector.shape_cast %9 : vector<1x8x16xf32> to vector<8x16xf32>
    %cst_8 = arith.constant dense<0.000000e+00> : vector<8x64xf32>
    %11 = tpu.matmul %10, %8, %cst_8 {dimension_numbers = #tpu.dot_dimension_numbers<[1], [1], [0], [0], [0, 0, 1, 0], [], []>} : vector<8x16xf32>, vector<64x16xf32>, vector<8x64xf32> -> vector<8x64xf32>
    %12 = arith.addf %6, %11 : vector<8x64xf32>
    %13 = vector.extract_strided_slice %1 {offsets = [1, 0, 0], sizes = [8, 8, 16], strides = [1, 1, 1]} : vector<9x9x16xf32> to vector<8x8x16xf32>
    %14 = vector.shape_cast %13 : vector<8x8x16xf32> to vector<64x16xf32>
    %c2 = arith.constant 2 : index
    %c0_9 = arith.constant 0 : index
    %c0_10 = arith.constant 0 : index
    %15 = vector.load %arg2[%c2, %c0_9, %c0_10] : memref<4x8x16xf32, #tpu.memory_space<vmem>>, vector<1x8x16xf32>
    %16 = vector.shape_cast %15 : vector<1x8x16xf32> to vector<8x16xf32>
    %cst_11 = arith.constant dense<0.000000e+00> : vector<8x64xf32>
    %17 = tpu.matmul %16, %14, %cst_11 {dimension_numbers = #tpu.dot_dimension_numbers<[1], [1], [0], [0], [0, 0, 1, 0], [], []>} : vector<8x16xf32>, vector<64x16xf32>, vector<8x64xf32> -> vector<8x64xf32>
    %18 = arith.addf %12, %17 : vector<8x64xf32>
    %19 = vector.extract_strided_slice %1 {offsets = [1, 1, 0], sizes = [8, 8, 16], strides = [1, 1, 1]} : vector<9x9x16xf32> to vector<8x8x16xf32>
    %20 = vector.shape_cast %19 : vector<8x8x16xf32> to vector<64x16xf32>
    %c3 = arith.constant 3 : index
    %c0_12 = arith.constant 0 : index
    %c0_13 = arith.constant 0 : index
    %21 = vector.load %arg2[%c3, %c0_12, %c0_13] : memref<4x8x16xf32, #tpu.memory_space<vmem>>, vector<1x8x16xf32>
    %22 = vector.shape_cast %21 : vector<1x8x16xf32> to vector<8x16xf32>
    %cst_14 = arith.constant dense<0.000000e+00> : vector<8x64xf32>
    %23 = tpu.matmul %22, %20, %cst_14 {dimension_numbers = #tpu.dot_dimension_numbers<[1], [1], [0], [0], [0, 0, 1, 0], [], []>} : vector<8x16xf32>, vector<64x16xf32>, vector<8x64xf32> -> vector<8x64xf32>
    %24 = arith.addf %18, %23 : vector<8x64xf32>
    %c0_15 = arith.constant 0 : index
    %c0_16 = arith.constant 0 : index
    %25 = vector.load %arg3[%c0_15, %c0_16] : memref<8x1xf32, #tpu.memory_space<vmem>>, vector<8x1xf32>
    %26 = vector.broadcast %25 : vector<8x1xf32> to vector<8x64xf32>
    %27 = arith.addf %24, %26 : vector<8x64xf32>
    %c0_17 = arith.constant 0 : index
    %c0_18 = arith.constant 0 : index
    %c0_19 = arith.constant 0 : index
    %28 = vector.load %arg4[%c0_17, %c0_18, %c0_19] : memref<1x8x64xf32, #tpu.memory_space<vmem>>, vector<1x8x64xf32>
    %29 = vector.shape_cast %28 : vector<1x8x64xf32> to vector<8x64xf32>
    %30 = vector.shape_cast %27 : vector<8x64xf32> to vector<1x8x64xf32>
    tpu.vector_store %arg4[%c0_17, %c0_18, %c0_19], %30 {strides = array<i32>} : memref<1x8x64xf32, #tpu.memory_space<vmem>>, vector<1x8x64xf32>,
    return
  }
  func.func @transform_0(%arg0: i32) -> (i32, i32, i32, i32) {
    %c0_i32 = arith.constant 0 : i32
    %c0_i32_0 = arith.constant 0 : i32
    %c0_i32_1 = arith.constant 0 : i32
    %c0_i32_2 = arith.constant 0 : i32
    return %arg0, %c0_i32, %c0_i32_0, %c0_i32_1 : i32, i32, i32, i32
  }
  func.func @transform_1(%arg0: i32) -> (i32, i32, i32) {
    %c0_i32 = arith.constant 0 : i32
    %c0_i32_0 = arith.constant 0 : i32
    %c0_i32_1 = arith.constant 0 : i32
    %c0_i32_2 = arith.constant 0 : i32
    return %c0_i32, %c0_i32_0, %c0_i32_1 : i32, i32, i32
  }
  func.func @transform_2(%arg0: i32) -> (i32, i32) {
    %c0_i32 = arith.constant 0 : i32
    %c0_i32_0 = arith.constant 0 : i32
    %c0_i32_1 = arith.constant 0 : i32
    return %c0_i32, %c0_i32_0 : i32, i32
  }
  func.func @transform_3(%arg0: i32) -> (i32, i32, i32) {
    %c0_i32 = arith.constant 0 : i32
    %c0_i32_0 = arith.constant 0 : i32
    %c0_i32_1 = arith.constant 0 : i32
    return %arg0, %c0_i32, %c0_i32_0 : i32, i32, i32
  }
}

</mosaic_0001>

<llo_original>
// kernel: downsample_forward.1
$region0: #{downsample_forward.1}
  #allocation0 [shape = 'u32[]', space=smem, size = 0x4, offset = 0x4, fixed_abs, tag = 'smem constant byte address 0x4 - core index']
  #allocation1 [shape = 'u32[144,128]{1,0:T(1,128)}', space=vmem, size = 0x12000, scoped, tag = 'internal scratch']
  %s0 = inlined_call_operand.vmem [shape: f32[2,9,9,16], index: 0, kind: input, shape index: {}]
  %s1 = inlined_call_operand.vmem [shape: f32[4,8,16], index: 1, kind: input, shape index: {}]
  %s2 = inlined_call_operand.vmem [shape: f32[8,1], index: 2, kind: input, shape index: {}]
  %s3 = inlined_call_operand.hbm [shape: f32[2,8,64], index: 3, kind: output, shape index: {}]
  %s4 = sld [smem:[#allocation0]]
  $region45: #{downsample_forward.1} parent=0
    _
  %s6 = ssub.s32 1, %s4
  %s7 = scalar_select 0, %s6, %s4
  $region1: #{downsample_forward.1} parent=0
    #allocation2 [shape = 'u8[8192]{0}', space=vmem, size = 0x2000, scoped, tag = 'output window, operand 0']
    #allocation3 [shape = 's32[2]{0}', space=sflag, size = 0x8, scoped, tag = 'scoped memory for downsample_forward.1']
    %8 = vsyncpa [#allocation3], 0
    %s9 = scalar_lea.sflag [#allocation3], 1
    %10 = vsyncpa %s9, 0
    loop: start=0, step=1, limit=4
    $region2: #{downsample_forward.1} parent=1 // loop_pre_header
      _
    $region3: #{downsample_forward.1} parent=1 // loop_header
      %s12 = sphi 0, %s16
      %p13 = scmp.ge.s32.totalorder %s12, 4
      %s22 = sphi 0, %s24
      %s25 = sphi 0, %s22
      %s26 = sphi 0, %s25
      %s42 = sphi 0, %s26
      %s46 = sphi 0, %s46
      %s48 = sphi 0, %s46
      %s49 = sphi 0, %s48
      %s63 = sphi 0, %s49
      %s67 = sphi 0, %s67
      %s69 = sphi 0, %s67
      %s70 = sphi 0, %s69
      %s84 = sphi 0, %s70
      %s90 = sphi 0, %s92
      %s93 = sphi 0, %s90
      %s94 = sphi 0, %s93
      %s110 = sphi 0, %s94
    $region4: #{downsample_forward.1} parent=1 // loop_header_branch
      %15 = sbr.rel (%p13) target = $region8
    $region5: #{downsample_forward.1} parent=1 // loop_body
      %s17 = ssub.s32 %s12, 1
      %s18 = ssub.s32 %s12, 2
      %s19 = sadd.s32 %s12, 1
      %s20 = ssub.s32 %s12, %s19
      %p21 = scmp.eq.s32.totalorder %s20, 0
      %s23 = sadd.s32 %s22, 1
      %s24 = scalar_select %p21, %s22, %s23
      %p27 = pneg %p21
      %p28 = scmp.eq.s32.totalorder %s12, 1
      %p29 = por %p27, %p28
      %p30 = scmp.ne.s32.totalorder %s22, %s25
      %p31 = scmp.eq.s32.totalorder %s12, 0
      %p32 = por %p30, %p31
      %p33 = scmp.ne.s32.totalorder %s22, %s25
      %p34 = scmp.eq.s32.totalorder %s17, 1
      %p35 = por %p33, %p34
      %p36 = scmp.ne.s32.totalorder %s25, %s26
      %p37 = scmp.eq.s32.totalorder %s17, 0
      %p38 = por %p36, %p37
      %p39 = scmp.ne.s32.totalorder %s25, %s26
      %p40 = scmp.eq.s32.totalorder %s18, 1
      %p41 = por %p39, %p40
      %p43 = scmp.ne.s32.totalorder %s26, %s42
      %p44 = scmp.eq.s32.totalorder %s18, 0
      %p45 = por %p43, %p44
      %s47 = sadd.s32 %s46, 1
      %p50 = scmp.eq.s32.totalorder %s12, 1
      %p51 = scmp.ne.s32.totalorder %s46, %s48
      %p52 = scmp.eq.s32.totalorder %s12, 0
      %p53 = por %p51, %p52
      %p54 = scmp.ne.s32.totalorder %s46, %s48
      %p55 = scmp.eq.s32.totalorder %s17, 1
      %p56 = por %p54, %p55
      %p57 = scmp.ne.s32.totalorder %s48, %s49
      %p58 = scmp.eq.s32.totalorder %s17, 0
      %p59 = por %p57, %p58
      %p60 = scmp.ne.s32.totalorder %s48, %s49
      %p61 = scmp.eq.s32.totalorder %s18, 1
      %p62 = por %p60, %p61
      %p64 = scmp.ne.s32.totalorder %s49, %s63
      %p65 = scmp.eq.s32.totalorder %s18, 0
      %p66 = por %p64, %p65
      %s68 = sadd.s32 %s67, 1
      %p71 = scmp.eq.s32.totalorder %s12, 1
      %p72 = scmp.ne.s32.totalorder %s67, %s69
      %p73 = scmp.eq.s32.totalorder %s12, 0
      %p74 = por %p72, %p73
      %p75 = scmp.ne.s32.totalorder %s67, %s69
      %p76 = scmp.eq.s32.totalorder %s17, 1
      %p77 = por %p75, %p76
      %p78 = scmp.ne.s32.totalorder %s69, %s70
      %p79 = scmp.eq.s32.totalorder %s17, 0
      %p80 = por %p78, %p79
      %p81 = scmp.ne.s32.totalorder %s69, %s70
      %p82 = scmp.eq.s32.totalorder %s18, 1
      %p83 = por %p81, %p82
      %p85 = scmp.ne.s32.totalorder %s70, %s84
      %p86 = scmp.eq.s32.totalorder %s18, 0
      %p87 = por %p85, %p86
      %s88 = ssub.s32 %s12, %s19
      %p89 = scmp.eq.s32.totalorder %s88, 0
      %s91 = sadd.s32 %s90, 1
      %s92 = scalar_select %p89, %s90, %s91
      %p95 = pneg %p89
      %p96 = scmp.eq.s32.totalorder %s12, 1
      %p97 = por %p95, %p96
      %p98 = scmp.ne.s32.totalorder %s90, %s93
      %p99 = scmp.eq.s32.totalorder %s12, 0
      %p100 = por %p98, %p99
      %p101 = scmp.ne.s32.totalorder %s90, %s93
      %p102 = scmp.eq.s32.totalorder %s17, 1
      %p103 = por %p101, %p102
      %p104 = scmp.ne.s32.totalorder %s93, %s94
      %p105 = scmp.eq.s32.totalorder %s17, 0
      %p106 = por %p104, %p105
      %p107 = scmp.ne.s32.totalorder %s93, %s94
      %p108 = scmp.eq.s32.totalorder %s18, 1
      %p109 = por %p107, %p108
      %p111 = scmp.ne.s32.totalorder %s94, %s110
      %p112 = scmp.eq.s32.totalorder %s18, 0
      %p113 = por %p111, %p112
      %p114 = scmp.le.s32.totalorder 1, %s12
      %p115 = scmp.lt.s32.totalorder %s12, 3
      %p116 = pnand %p114, %p115
      %p117 = pneg %p116
      // Predicated region
      $region9: #{downsample_forward.1} parent=5 // pred_check
        _
      $region10: #{downsample_forward.1} parent=5 // pred_check_branch
        %119 = sbr.rel (%p116) target = $region12
      $region11: #{downsample_forward.1} parent=5 // pred_region
        %s120 = ssub.s32 %s12, 1
        // Predicated region
        $region13: #{downsample_forward.1} parent=11 // pred_check
          %p121 = pneg %p59
        $region14: #{downsample_forward.1} parent=11 // pred_check_branch
          %123 = sbr.rel (%p121) target = $region16
        $region15: #{downsample_forward.1} parent=11 // pred_region
          _
        $region16: #{downsample_forward.1} parent=11 // pred_fallthru
          _
        // Predicated region
        $region17: #{downsample_forward.1} parent=11 // pred_check
          %p124 = pneg %p80
        $region18: #{downsample_forward.1} parent=11 // pred_check_branch
          %126 = sbr.rel (%p124) target = $region20
        $region19: #{downsample_forward.1} parent=11 // pred_region
          _
        $region20: #{downsample_forward.1} parent=11 // pred_fallthru
          _
      $region12: #{downsample_forward.1} parent=5 // pred_fallthru
        _
      %p127 = scmp.lt.s32.totalorder %s12, 2
      // Predicated region
      $region21: #{downsample_forward.1} parent=5 // pred_check
        %p128 = pneg %p127
      $region22: #{downsample_forward.1} parent=5 // pred_check_branch
        %130 = sbr.rel (%p128) target = $region24
      $region23: #{downsample_forward.1} parent=5 // pred_region
        // Predicated region
        $region25: #{downsample_forward.1} parent=23 // pred_check
          %p131 = pneg %p32
        $region26: #{downsample_forward.1} parent=23 // pred_check_branch
          %133 = sbr.rel (%p131) target = $region28
        $region27: #{downsample_forward.1} parent=23 // pred_region
          %p134 = scmp.lt.s32.totalorder %s12, 1
          %s135 = scalar_select %p134, %s12, 1
          %s136 = smul.addr %s135, 18
          %s137 = smul.addr %s136, 8
          %s138 = scalar_lea.vmem %s0, %s137
        $region28: #{downsample_forward.1} parent=23 // pred_fallthru
          _
      $region24: #{downsample_forward.1} parent=5 // pred_fallthru
        _
      %p139 = scmp.le.s32.totalorder 1, %s12
      %p140 = scmp.lt.s32.totalorder %s12, 3
      %p141 = pnand %p139, %p140
      %p142 = pneg %p141
      // Predicated region
      $region29: #{downsample_forward.1} parent=5 // pred_check
        _
      $region30: #{downsample_forward.1} parent=5 // pred_check_branch
        %144 = sbr.rel (%p141) target = $region32
      $region31: #{downsample_forward.1} parent=5 // pred_region
        %s145 = ssub.s32 %s12, 1
        %p146 = scmp.lt.s32.totalorder %s17, 1
        %s147 = scalar_select %p146, %s17, 1
        %s148 = smul.addr %s147, 18
        %s149 = smul.addr %s148, 8
        %s150 = scalar_lea.vmem %s0, %s149
        %p151 = pneg %p38
        %p152 = pneg %p35
        %p153 = pneg %p59
        %p154 = pneg %p56
        %p155 = pneg %p80
        %p156 = pneg %p77
        %p157 = pneg %p106
        %p158 = pneg %p103
        %s159 = sand.u32 %s93, 1
        %s160 = scalar_lea.sflag [#allocation3], %s159
        %s161 = sand.u32 %s93, 1
        %s162 = smul.addr %s161, 8
        %s163 = scalar_lea.vmem [#allocation2], %s162
        %p164 = scmp.lt.s32.totalorder %s17, 1
        %s165 = scalar_select %p164, %s17, 1
        %s166 = smul.addr %s165, 18
        %s167 = smul.addr %s166, 8
        %s168 = scalar_lea.vmem %s0, %s167
        %v169 = vld [vmem:[%s168] sm:$0xff]
        %v170 = vld [vmem:[%s168 + $0x8] sm:$0x1]
        %v171 = vld [vmem:[%s168 + $0x10] sm:$0xff]
        %v172 = vld [vmem:[%s168 + $0x18] sm:$0x1]
        %v173 = vld [vmem:[%s168 + $0x20] sm:$0xff]
        %v174 = vld [vmem:[%s168 + $0x28] sm:$0x1]
        %v175 = vld [vmem:[%s168 + $0x30] sm:$0xff]
        %v176 = vld [vmem:[%s168 + $0x38] sm:$0x1]
        %v177 = vld [vmem:[%s168 + $0x40] sm:$0xff]
        %v178 = vld [vmem:[%s168 + $0x48] sm:$0x1]
        %v179 = vld [vmem:[%s168 + $0x50] sm:$0xff]
        %v180 = vld [vmem:[%s168 + $0x58] sm:$0x1]
        %v181 = vld [vmem:[%s168 + $0x60] sm:$0xff]
        %v182 = vld [vmem:[%s168 + $0x68] sm:$0x1]
        %v183 = vld [vmem:[%s168 + $0x70] sm:$0xff]
        %v184 = vld [vmem:[%s168 + $0x78] sm:$0x1]
        %v185 = vld [vmem:[%s168 + $0x80] sm:$0xff]
        %v186 = vld [vmem:[%s168 + $0x88] sm:$0x1]
        %v187 = vld [vmem:[%s1] sm:$0xff]
        %vm204 = vcmask 1046528
        %v205 = vrot.slane %v169, 1
        %v206 = vrot.slane %v170, 1
        %v207 = vsel %vm204, %v205, %v206
        %v208 = vrot.slane %v171, 1
        %v209 = vrot.slane %v172, 1
        %v210 = vsel %vm204, %v208, %v209
        %v211 = vrot.slane %v173, 1
        %v212 = vrot.slane %v174, 1
        %v213 = vsel %vm204, %v211, %v212
        %v214 = vrot.slane %v175, 1
        %v215 = vrot.slane %v176, 1
        %v216 = vsel %vm204, %v214, %v215
        %v217 = vrot.slane %v177, 1
        %v218 = vrot.slane %v178, 1
        %v219 = vsel %vm204, %v217, %v218
        %v220 = vrot.slane %v179, 1
        %v221 = vrot.slane %v180, 1
        %v222 = vsel %vm204, %v220, %v221
        %v223 = vrot.slane %v181, 1
        %v224 = vrot.slane %v182, 1
        %v225 = vsel %vm204, %v223, %v224
        %v226 = vrot.slane %v183, 1
        %v227 = vrot.slane %v184, 1
        %v228 = vsel %vm204, %v226, %v227
        %s229 = scalar_lea.vmem %s1, 8
        %v230 = vld [vmem:[%s229] sm:$0xff]
        %vm231 = vcmask 130048
        %v233 = vsel %vm231, %v230, 0
        %v235 = vsel %vm231, %v207, 0
        %v237 = vsel %vm231, %v210, 0
        %v239 = vsel %vm231, %v213, 0
        %v241 = vsel %vm231, %v216, 0
        %v243 = vsel %vm231, %v219, 0
        %v245 = vsel %vm231, %v222, 0
        %v247 = vsel %vm231, %v225, 0
        %v249 = vsel %vm231, %v228, 0
        %251 = vmatprep.subr.mxu0 0.0
        %252 = vmatpush1.xpose.msra.mxu0 %v235
        %253 = vmatprep.subr.mxu0 0.0
        %254 = vmatpush1.xpose.msra.mxu0 %v237
        %255 = vmatprep.subr.mxu0 0.0
        %256 = vmatpush1.xpose.msra.mxu0 %v239
        %257 = vmatprep.subr.mxu0 0.0
        %258 = vmatpush1.xpose.msra.mxu0 %v241
        %259 = vmatprep.subr.mxu0 0.0
        %260 = vmatpush1.xpose.msra.mxu0 %v243
        %261 = vmatprep.subr.mxu0 0.0
        %262 = vmatpush1.xpose.msra.mxu0 %v245
        %263 = vmatprep.subr.mxu0 0.0
        %264 = vmatpush1.xpose.msra.mxu0 %v247
        %265 = vmatprep.subr.mxu0 0.0
        %266 = vmatpush1.xpose.msra.mxu0 %v249
        %267 = vmatprep.subr.mxu0 0.0
        %268 = vmatpush1.xpose.msra.mxu0 0.0
        %269 = vmatprep.subr.mxu0 0.0
        %270 = vmatpush1.xpose.msra.mxu0 0.0
        %271 = vmatprep.subr.mxu0 0.0
        %272 = vmatpush1.xpose.msra.mxu0 0.0
        %273 = vmatprep.subr.mxu0 0.0
        %274 = vmatpush1.xpose.msra.mxu0 0.0
        %275 = vmatprep.subr.mxu0 0.0
        %276 = vmatpush1.xpose.msra.mxu0 0.0
        %277 = vmatprep.subr.mxu0 0.0
        %278 = vmatpush1.xpose.msra.mxu0 0.0
        %279 = vmatprep.subr.mxu0 0.0
        %280 = vmatpush1.xpose.msra.mxu0 0.0
        %281 = vmatprep.subr.mxu0 0.0
        %282 = vmatpush1.xpose.msra.mxu0 0.0
        %283 = vmatprep.subr.mxu0 0.0
        %284 = vmatpush1.xpose.msra.mxu0 0.0
        %285 = vmatprep.subr.mxu0 0.0
        %286 = vmatpush1.xpose.msra.mxu0 0.0
        %287 = vmatprep.subr.mxu0 0.0
        %288 = vmatpush1.xpose.msra.mxu0 0.0
        %289 = vmatprep.subr.mxu0 0.0
        %290 = vmatpush1.xpose.msra.mxu0 0.0
        %291 = vmatprep.subr.mxu0 0.0
        %292 = vmatpush1.xpose.msra.mxu0 0.0
        %293 = vmatprep.subr.mxu0 0.0
        %294 = vmatpush1.xpose.msra.mxu0 0.0
        %295 = vmatprep.subr.mxu0 0.0
        %296 = vmatpush1.xpose.msra.mxu0 0.0
        %297 = vmatprep.subr.mxu0 0.0
        %298 = vmatpush1.xpose.msra.mxu0 0.0
        %299 = vmatprep.subr.mxu0 0.0
        %300 = vmatpush1.xpose.msra.mxu0 0.0
        %301 = vmatprep.subr.mxu0 0.0
        %302 = vmatpush1.xpose.msra.mxu0 0.0
        %303 = vmatprep.subr.mxu0 0.0
        %304 = vmatpush1.xpose.msra.mxu0 0.0
        %305 = vmatprep.subr.mxu0 0.0
        %306 = vmatpush1.xpose.msra.mxu0 0.0
        %307 = vmatprep.subr.mxu0 0.0
        %308 = vmatpush1.xpose.msra.mxu0 0.0
        %309 = vmatprep.subr.mxu0 0.0
        %310 = vmatpush1.xpose.msra.mxu0 0.0
        %311 = vmatprep.subr.mxu0 0.0
        %312 = vmatpush1.xpose.msra.mxu0 0.0
        %313 = vmatprep.subr.mxu0 0.0
        %314 = vmatpush1.xpose.msra.mxu0 0.0
        %315 = vmatprep.mubr.f32.mxu0 0.0
        %316 = vmatmul.mubr.f32.gmra.mrb[0].mxu0 %v233
        %v317 = vpop.f32.mrb[0].mxu0
        %v318 = vadd.f32 0.0, %v317
        %v319 = vpop.f32.mrb[0].mxu0
        %320 = vdwg.mxu0
        %v322 = vsel %vm231, %v187, 0
        %v324 = vsel %vm231, %v169, 0
        %v326 = vsel %vm231, %v171, 0
        %v328 = vsel %vm231, %v173, 0
        %v330 = vsel %vm231, %v175, 0
        %v332 = vsel %vm231, %v177, 0
        %v334 = vsel %vm231, %v179, 0
        %v336 = vsel %vm231, %v181, 0
        %v338 = vsel %vm231, %v183, 0
        %340 = vmatprep.subr.mxu0 0.0
        %341 = vmatpush1.xpose.msra.mxu0 %v324
        %342 = vmatprep.subr.mxu0 0.0
        %343 = vmatpush1.xpose.msra.mxu0 %v326
        %344 = vmatprep.subr.mxu0 0.0
        %345 = vmatpush1.xpose.msra.mxu0 %v328
        %346 = vmatprep.subr.mxu0 0.0
        %347 = vmatpush1.xpose.msra.mxu0 %v330
        %348 = vmatprep.subr.mxu0 0.0
        %349 = vmatpush1.xpose.msra.mxu0 %v332
        %350 = vmatprep.subr.mxu0 0.0
        %351 = vmatpush1.xpose.msra.mxu0 %v334
        %352 = vmatprep.subr.mxu0 0.0
        %353 = vmatpush1.xpose.msra.mxu0 %v336
        %354 = vmatprep.subr.mxu0 0.0
        %355 = vmatpush1.xpose.msra.mxu0 %v338
        %356 = vmatprep.subr.mxu0 0.0
        %357 = vmatpush1.xpose.msra.mxu0 0.0
        %358 = vmatprep.subr.mxu0 0.0
        %359 = vmatpush1.xpose.msra.mxu0 0.0
        %360 = vmatprep.subr.mxu0 0.0
        %361 = vmatpush1.xpose.msra.mxu0 0.0
        %362 = vmatprep.subr.mxu0 0.0
        %363 = vmatpush1.xpose.msra.mxu0 0.0
        %364 = vmatprep.subr.mxu0 0.0
        %365 = vmatpush1.xpose.msra.mxu0 0.0
        %366 = vmatprep.subr.mxu0 0.0
        %367 = vmatpush1.xpose.msra.mxu0 0.0
        %368 = vmatprep.subr.mxu0 0.0
        %369 = vmatpush1.xpose.msra.mxu0 0.0
        %370 = vmatprep.subr.mxu0 0.0
        %371 = vmatpush1.xpose.msra.mxu0 0.0
        %372 = vmatprep.subr.mxu0 0.0
        %373 = vmatpush1.xpose.msra.mxu0 0.0
        %374 = vmatprep.subr.mxu0 0.0
        %375 = vmatpush1.xpose.msra.mxu0 0.0
        %376 = vmatprep.subr.mxu0 0.0
        %377 = vmatpush1.xpose.msra.mxu0 0.0
        %378 = vmatprep.subr.mxu0 0.0
        %379 = vmatpush1.xpose.msra.mxu0 0.0
        %380 = vmatprep.subr.mxu0 0.0
        %381 = vmatpush1.xpose.msra.mxu0 0.0
        %382 = vmatprep.subr.mxu0 0.0
        %383 = vmatpush1.xpose.msra.mxu0 0.0
        %384 = vmatprep.subr.mxu0 0.0
        %385 = vmatpush1.xpose.msra.mxu0 0.0
        %386 = vmatprep.subr.mxu0 0.0
        %387 = vmatpush1.xpose.msra.mxu0 0.0
        %388 = vmatprep.subr.mxu0 0.0
        %389 = vmatpush1.xpose.msra.mxu0 0.0
        %390 = vmatprep.subr.mxu0 0.0
        %391 = vmatpush1.xpose.msra.mxu0 0.0
        %392 = vmatprep.subr.mxu0 0.0
        %393 = vmatpush1.xpose.msra.mxu0 0.0
        %394 = vmatprep.subr.mxu0 0.0
        %395 = vmatpush1.xpose.msra.mxu0 0.0
        %396 = vmatprep.subr.mxu0 0.0
        %397 = vmatpush1.xpose.msra.mxu0 0.0
        %398 = vmatprep.subr.mxu0 0.0
        %399 = vmatpush1.xpose.msra.mxu0 0.0
        %400 = vmatprep.subr.mxu0 0.0
        %401 = vmatpush1.xpose.msra.mxu0 0.0
        %402 = vmatprep.subr.mxu0 0.0
        %403 = vmatpush1.xpose.msra.mxu0 0.0
        %404 = vmatprep.mubr.f32.mxu0 0.0
        %405 = vmatmul.mubr.f32.gmra.mrb[0].mxu0 %v322
        %v406 = vpop.f32.mrb[0].mxu0
        %v407 = vadd.f32 %v318, %v406
        %v408 = vpop.f32.mrb[0].mxu0
        %409 = vdwg.mxu0
        %s410 = scalar_lea.vmem %s1, 16
        %v411 = vld [vmem:[%s410] sm:$0xff]
        %v413 = vsel %vm231, %v411, 0
        %v416 = vsel %vm231, %v185, 0
        %418 = vmatprep.subr.mxu0 0.0
        %419 = vmatpush1.xpose.msra.mxu0 %v326
        %420 = vmatprep.subr.mxu0 0.0
        %421 = vmatpush1.xpose.msra.mxu0 %v328
        %422 = vmatprep.subr.mxu0 0.0
        %423 = vmatpush1.xpose.msra.mxu0 %v330
        %424 = vmatprep.subr.mxu0 0.0
        %425 = vmatpush1.xpose.msra.mxu0 %v332
        %426 = vmatprep.subr.mxu0 0.0
        %427 = vmatpush1.xpose.msra.mxu0 %v334
        %428 = vmatprep.subr.mxu0 0.0
        %429 = vmatpush1.xpose.msra.mxu0 %v336
        %430 = vmatprep.subr.mxu0 0.0
        %431 = vmatpush1.xpose.msra.mxu0 %v338
        %432 = vmatprep.subr.mxu0 0.0
        %433 = vmatpush1.xpose.msra.mxu0 %v416
        %434 = vmatprep.subr.mxu0 0.0
        %435 = vmatpush1.xpose.msra.mxu0 0.0
        %436 = vmatprep.subr.mxu0 0.0
        %437 = vmatpush1.xpose.msra.mxu0 0.0
        %438 = vmatprep.subr.mxu0 0.0
        %439 = vmatpush1.xpose.msra.mxu0 0.0
        %440 = vmatprep.subr.mxu0 0.0
        %441 = vmatpush1.xpose.msra.mxu0 0.0
        %442 = vmatprep.subr.mxu0 0.0
        %443 = vmatpush1.xpose.msra.mxu0 0.0
        %444 = vmatprep.subr.mxu0 0.0
        %445 = vmatpush1.xpose.msra.mxu0 0.0
        %446 = vmatprep.subr.mxu0 0.0
        %447 = vmatpush1.xpose.msra.mxu0 0.0
        %448 = vmatprep.subr.mxu0 0.0
        %449 = vmatpush1.xpose.msra.mxu0 0.0
        %450 = vmatprep.subr.mxu0 0.0
        %451 = vmatpush1.xpose.msra.mxu0 0.0
        %452 = vmatprep.subr.mxu0 0.0
        %453 = vmatpush1.xpose.msra.mxu0 0.0
        %454 = vmatprep.subr.mxu0 0.0
        %455 = vmatpush1.xpose.msra.mxu0 0.0
        %456 = vmatprep.subr.mxu0 0.0
        %457 = vmatpush1.xpose.msra.mxu0 0.0
        %458 = vmatprep.subr.mxu0 0.0
        %459 = vmatpush1.xpose.msra.mxu0 0.0
        %460 = vmatprep.subr.mxu0 0.0
        %461 = vmatpush1.xpose.msra.mxu0 0.0
        %462 = vmatprep.subr.mxu0 0.0
        %463 = vmatpush1.xpose.msra.mxu0 0.0
        %464 = vmatprep.subr.mxu0 0.0
        %465 = vmatpush1.xpose.msra.mxu0 0.0
        %466 = vmatprep.subr.mxu0 0.0
        %467 = vmatpush1.xpose.msra.mxu0 0.0
        %468 = vmatprep.subr.mxu0 0.0
        %469 = vmatpush1.xpose.msra.mxu0 0.0
        %470 = vmatprep.subr.mxu0 0.0
        %471 = vmatpush1.xpose.msra.mxu0 0.0
        %472 = vmatprep.subr.mxu0 0.0
        %473 = vmatpush1.xpose.msra.mxu0 0.0
        %474 = vmatprep.subr.mxu0 0.0
        %475 = vmatpush1.xpose.msra.mxu0 0.0
        %476 = vmatprep.subr.mxu0 0.0
        %477 = vmatpush1.xpose.msra.mxu0 0.0
        %478 = vmatprep.subr.mxu0 0.0
        %479 = vmatpush1.xpose.msra.mxu0 0.0
        %480 = vmatprep.subr.mxu0 0.0
        %481 = vmatpush1.xpose.msra.mxu0 0.0
        %482 = vmatprep.mubr.f32.mxu0 0.0
        %483 = vmatmul.mubr.f32.gmra.mrb[0].mxu0 %v413
        %v484 = vpop.f32.mrb[0].mxu0
        %v485 = vadd.f32 0.0, %v484
        %v486 = vpop.f32.mrb[0].mxu0
        %487 = vdwg.mxu0
        %v488 = vadd.f32 %v407, %v485
        %v490 = vrot.slane %v185, 1
        %v491 = vrot.slane %v186, 1
        %v492 = vsel %vm204, %v490, %v491
        %s493 = scalar_lea.vmem %s1, 24
        %v494 = vld [vmem:[%s493] sm:$0xff]
        %v496 = vsel %vm231, %v494, 0
        %v498 = vsel %vm231, %v492, 0
        %500 = vmatprep.subr.mxu0 0.0
        %501 = vmatpush1.xpose.msra.mxu0 %v237
        %502 = vmatprep.subr.mxu0 0.0
        %503 = vmatpush1.xpose.msra.mxu0 %v239
        %504 = vmatprep.subr.mxu0 0.0
        %505 = vmatpush1.xpose.msra.mxu0 %v241
        %506 = vmatprep.subr.mxu0 0.0
        %507 = vmatpush1.xpose.msra.mxu0 %v243
        %508 = vmatprep.subr.mxu0 0.0
        %509 = vmatpush1.xpose.msra.mxu0 %v245
        %510 = vmatprep.subr.mxu0 0.0
        %511 = vmatpush1.xpose.msra.mxu0 %v247
        %512 = vmatprep.subr.mxu0 0.0
        %513 = vmatpush1.xpose.msra.mxu0 %v249
        %514 = vmatprep.subr.mxu0 0.0
        %515 = vmatpush1.xpose.msra.mxu0 %v498
        %516 = vmatprep.subr.mxu0 0.0
        %517 = vmatpush1.xpose.msra.mxu0 0.0
        %518 = vmatprep.subr.mxu0 0.0
        %519 = vmatpush1.xpose.msra.mxu0 0.0
        %520 = vmatprep.subr.mxu0 0.0
        %521 = vmatpush1.xpose.msra.mxu0 0.0
        %522 = vmatprep.subr.mxu0 0.0
        %523 = vmatpush1.xpose.msra.mxu0 0.0
        %524 = vmatprep.subr.mxu0 0.0
        %525 = vmatpush1.xpose.msra.mxu0 0.0
        %526 = vmatprep.subr.mxu0 0.0
        %527 = vmatpush1.xpose.msra.mxu0 0.0
        %528 = vmatprep.subr.mxu0 0.0
        %529 = vmatpush1.xpose.msra.mxu0 0.0
        %530 = vmatprep.subr.mxu0 0.0
        %531 = vmatpush1.xpose.msra.mxu0 0.0
        %532 = vmatprep.subr.mxu0 0.0
        %533 = vmatpush1.xpose.msra.mxu0 0.0
        %534 = vmatprep.subr.mxu0 0.0
        %535 = vmatpush1.xpose.msra.mxu0 0.0
        %536 = vmatprep.subr.mxu0 0.0
        %537 = vmatpush1.xpose.msra.mxu0 0.0
        %538 = vmatprep.subr.mxu0 0.0
        %539 = vmatpush1.xpose.msra.mxu0 0.0
        %540 = vmatprep.subr.mxu0 0.0
        %541 = vmatpush1.xpose.msra.mxu0 0.0
        %542 = vmatprep.subr.mxu0 0.0
        %543 = vmatpush1.xpose.msra.mxu0 0.0
        %544 = vmatprep.subr.mxu0 0.0
        %545 = vmatpush1.xpose.msra.mxu0 0.0
        %546 = vmatprep.subr.mxu0 0.0
        %547 = vmatpush1.xpose.msra.mxu0 0.0
        %548 = vmatprep.subr.mxu0 0.0
        %549 = vmatpush1.xpose.msra.mxu0 0.0
        %550 = vmatprep.subr.mxu0 0.0
        %551 = vmatpush1.xpose.msra.mxu0 0.0
        %552 = vmatprep.subr.mxu0 0.0
        %553 = vmatpush1.xpose.msra.mxu0 0.0
        %554 = vmatprep.subr.mxu0 0.0
        %555 = vmatpush1.xpose.msra.mxu0 0.0
        %556 = vmatprep.subr.mxu0 0.0
        %557 = vmatpush1.xpose.msra.mxu0 0.0
        %558 = vmatprep.subr.mxu0 0.0
        %559 = vmatpush1.xpose.msra.mxu0 0.0
        %560 = vmatprep.subr.mxu0 0.0
        %561 = vmatpush1.xpose.msra.mxu0 0.0
        %562 = vmatprep.subr.mxu0 0.0
        %563 = vmatpush1.xpose.msra.mxu0 0.0
        %564 = vmatprep.mubr.f32.mxu0 0.0
        %565 = vmatmul.mubr.f32.gmra.mrb[0].mxu0 %v496
        %v566 = vpop.f32.mrb[0].mxu0
        %v567 = vadd.f32 0.0, %v566
        %v568 = vpop.f32.mrb[0].mxu0
        %569 = vdwg.mxu0
        %v570 = vadd.f32 %v488, %v567
        %v571 = vld [vmem:[%s2] sm:$0xff]
        %573 = vset.pattern.permute.xlu0 0
        %574 = vperm.xlu0 %573, %v571
        %v575 = vpop.permute.xlu0 %574
        %v577 = vadd.f32 %v570, %v575
        %vm578 = vcmask 523264
        %579 = vst.msk [vmem:[%s163] sm:$0xff] %vm578, %v577
        %s580 = sand.u32 %s93, 1
        %s581 = scalar_lea.sflag [#allocation3], %s580
        %s582 = sand.u32 %s93, 1
        %s583 = smul.addr %s582, 8
        %s584 = scalar_lea.vmem [#allocation2], %s583
        // Predicated region
        $region33: #{downsample_forward.1} parent=31 // pred_check
          %p585 = pneg %p103
        $region34: #{downsample_forward.1} parent=31 // pred_check_branch
          %587 = sbr.rel (%p585) target = $region36
        $region35: #{downsample_forward.1} parent=31 // pred_region
          %s589 = ssub.s32 128, 128
          %590 = vsyncadd %s581, %s589
          %s591 = smul.addr %s17, 128
          %s592 = scalar_lea.hbm %s3, %s591
          %s594 = sshll.u32 %s584, 4
          %s595 = int_to_ptr.vmem [resolvable:$true] %s594
          %597 = dma.vmem_to_hbm [thread:$0]  %s595, 128, %s592, %s581
        $region36: #{downsample_forward.1} parent=31 // pred_fallthru
          _
      $region32: #{downsample_forward.1} parent=5 // pred_fallthru
        _
      %p598 = scmp.le.s32.totalorder 2, %s12
      // Predicated region
      $region37: #{downsample_forward.1} parent=5 // pred_check
        %p599 = pneg %p598
      $region38: #{downsample_forward.1} parent=5 // pred_check_branch
        %601 = sbr.rel (%p599) target = $region40
      $region39: #{downsample_forward.1} parent=5 // pred_region
        %s602 = ssub.s32 %s12, 2
        // Predicated region
        $region41: #{downsample_forward.1} parent=39 // pred_check
          %p603 = pneg %p109
        $region42: #{downsample_forward.1} parent=39 // pred_check_branch
          %605 = sbr.rel (%p603) target = $region44
        $region43: #{downsample_forward.1} parent=39 // pred_region
          %s606 = sand.u32 %s94, 1
          %s607 = scalar_lea.sflag [#allocation3], %s606
          %s608 = sand.u32 %s94, 1
          %s609 = smul.addr %s608, 8
          %s610 = scalar_lea.vmem [#allocation2], %s609
          %611 = dma.done %s607, 128
        $region44: #{downsample_forward.1} parent=39 // pred_fallthru
          _
      $region40: #{downsample_forward.1} parent=5 // pred_fallthru
        _
    $region6: #{downsample_forward.1} parent=1 // loop_footer
      %s16 = sadd.s32 1, %s12
    $region7: #{downsample_forward.1} parent=1 // loop_footer_branch
      %11 = sbr.rel target = $region3
    $region8: #{downsample_forward.1} parent=1 // loop_exit
      _
    %612 = vsyncpa [#allocation3], 1
    %s613 = scalar_lea.sflag [#allocation3], 1
    %614 = vsyncpa %s613, 1

</llo_original>
